<compile_context>
chip_gen: v7x
topology: tpu7x:2x2x1
jax: 0.10.0
libtpu: 0.0.40
codegen_flags: <defaults>
</compile_context>

<pallas_src>
import math

import jax
import jax.numpy as jnp
from jax.experimental import pallas as pl
from jax.experimental.pallas import tpu as pltpu


_VMEM_LIMIT_BYTES = 32 * 1024 * 1024   # <= physical VMEM on v5e/v6e/v7x
_VMEM_BLOCK_BUDGET = 24 * 1024 * 1024  # headroom under the limit
_MAX_BATCH_TILE = 16                   # static unroll bound inside the kernel


def _embed_add_pe_kernel(x_ref, pe_ref, o_ref):
    # x_ref : (B_tile, C, N)  raw conv-layout slab
    # pe_ref: (N, C)          positional encoding (shared across batch)
    # o_ref : (B_tile, N, C)  tokens-major output
    pe = pe_ref[...]
    for b in range(x_ref.shape[0]):                   # static unroll (<= 16)
        tokens = jnp.transpose(x_ref[b], (1, 0))      # (C, N) -> (N, C) on XLU
        o_ref[b] = (tokens + pe).astype(o_ref.dtype)


def _padded_tile_bytes(rows, cols, itemsize):
    """VMEM footprint of a (rows, cols) tile after (8, 128) layout padding."""
    return (-(-rows // 8) * 8) * (-(-cols // 128) * 128) * itemsize


def _pick_batch_tile(B, per_elem_in, per_elem_out, pe_bytes):
    """Largest divisor of B whose double-buffered blocks fit the VMEM budget,
    while keeping >= 2 grid steps (so v7x can shard across its 2 TCs)."""
    best = 1
    for bt in range(1, min(B, _MAX_BATCH_TILE) + 1):
        if B % bt:
            continue
        if B >= 2 and B // bt < 2:
            continue
        total = 2 * bt * (per_elem_in + per_elem_out) + 2 * pe_bytes
        if total <= _VMEM_BLOCK_BUDGET:
            best = bt
    return best


def embedding_forward(x_ncdhw, pe_full, *, out_dtype=None, min_pallas_bytes=1 << 20):
    """x_ncdhw: (B, hidden, D, H, W); pe_full: (max_len, hidden)."""
    B, C = x_ncdhw.shape[0], x_ncdhw.shape[1]
    N = 1
    for s in x_ncdhw.shape[2:]:
        N *= s
    assert N <= pe_full.shape[0], "sequence length exceeds max_len=256"

    out_dtype = x_ncdhw.dtype if out_dtype is None else out_dtype
    x_bcn = x_ncdhw.reshape(B, C, N)                  # flatten(2): free, contiguous
    pe = pe_full[:N, :].astype(x_bcn.dtype)           # (N, C), match x dtype

    in_itemsize = jnp.dtype(x_bcn.dtype).itemsize
    out_itemsize = jnp.dtype(out_dtype).itemsize

    # Tiny problems: custom-call + per-step overhead dominates -> let XLA fuse.
    if x_bcn.size * in_itemsize < min_pallas_bytes:
        return (jnp.transpose(x_bcn, (0, 2, 1)) + pe[None, :, :]).astype(out_dtype)

    per_elem_in = _padded_tile_bytes(C, N, in_itemsize)
    per_elem_out = _padded_tile_bytes(N, C, out_itemsize)
    pe_bytes = _padded_tile_bytes(N, C, in_itemsize)
    b_tile = _pick_batch_tile(B, per_elem_in, per_elem_out, pe_bytes)

    out = pl.pallas_call(
        _embed_add_pe_kernel,
        out_shape=jax.ShapeDtypeStruct((B, N, C), out_dtype),
        grid_spec=pltpu.PrefetchScalarGridSpec(
            num_scalar_prefetch=0,
            grid=(B // b_tile,),
            in_specs=[
                # Raw conv-layout slab; full (C, N) so the (8,128) rule is
                # satisfied for any C, N (block == full array dims).
                pl.BlockSpec((b_tile, C, N), lambda i: (i, 0, 0)),
                # Constant block index -> Pallas only re-DMAs pe when the block
                # index changes (it never does); it stays resident in VMEM.
                pl.BlockSpec((N, C), lambda i: (0, 0)),
            ],
            out_specs=pl.BlockSpec((b_tile, N, C), lambda i: (i, 0, 0)),
        ),
        compiler_params=pltpu.CompilerParams(
            dimension_semantics=("parallel",),
            vmem_limit_bytes=_VMEM_LIMIT_BYTES,
        ),
    )(x_bcn, pe)
    return out


def make_positional_encoding(hidden_size, max_len=256, dtype=jnp.float32):
    """Deterministic sinusoidal PE identical to the PyTorch __init__."""
    position = jnp.arange(0.0, max_len, dtype=jnp.float32)[:, None]           # (max_len, 1)
    div_term = jnp.exp(
        jnp.arange(0.0, hidden_size, 2, dtype=jnp.float32)
        * (-math.log(10000.0) / hidden_size)
    )                                                                          # (hidden/2,)
    angles = position * div_term                                               # (max_len, hidden/2)
    pe = jnp.zeros((max_len, hidden_size), dtype=jnp.float32)
    pe = pe.at[:, 0::2].set(jnp.sin(angles))
    pe = pe.at[:, 1::2].set(jnp.cos(angles))
    return pe.astype(dtype)


if __name__ == "__main__":
    # Small shapes consistent with the module: hidden_size = channel dim,
    # 3-D spatial volume flattened into the sequence (N = D*H*W <= 256).
    B, hidden, D, H, W = 2, 32, 4, 4, 4   # N = 64

    key = jax.random.PRNGKey(0)
    x = jax.random.normal(key, (B, hidden, D, H, W), dtype=jnp.float32)
    pe = make_positional_encoding(hidden_size=hidden, max_len=256)

    # Force the Pallas path (min_pallas_bytes=0) so the kernel is exercised
    # even at this toy size; production callers keep the default threshold.
    out = embedding_forward(x, pe, min_pallas_bytes=0)
    out = jax.block_until_ready(out)

    # Reference check in plain JAX (same semantics as the PyTorch forward).
    N = D * H * W
    ref = jnp.transpose(x.reshape(B, hidden, N), (0, 2, 1)) + pe[None, :N, :]
    assert out.shape == (B, N, hidden)
    assert jnp.allclose(out, ref, atol=1e-6), "mismatch vs reference"

    print("KERNEL_OK")
</pallas_src>

<mosaic_0001>
module attributes {stable_mosaic.version = 11 : i64} {
  func.func @_embed_add_pe_kernel(%arg0: i32, %arg1: memref<1x32x64xf32, #tpu.memory_space<vmem>>, %arg2: memref<64x32xf32, #tpu.memory_space<vmem>>, %arg3: memref<1x64x32xf32, #tpu.memory_space<vmem>>) attributes {dimension_semantics = [#tpu.dimension_semantics<parallel>], iteration_bounds = array<i64: 2>, scalar_prefetch = 0 : i64, scratch_operands = 0 : i64, tpu.core_type = #tpu.core_type<tc>, window_params = [{transform_indices = @transform_0, window_bounds = array<i64: 1, 32, 64>}, {pipeline_mode = #tpu.pipeline_mode<synchronous>, transform_indices = @transform_1, window_bounds = array<i64: 64, 32>}, {transform_indices = @transform_2, window_bounds = array<i64: 1, 64, 32>}]} {
    %c0 = arith.constant 0 : index
    %c0_0 = arith.constant 0 : index
    %0 = vector.load %arg2[%c0, %c0_0] : memref<64x32xf32, #tpu.memory_space<vmem>>, vector<64x32xf32>
    %c0_1 = arith.constant 0 : index
    %c0_2 = arith.constant 0 : index
    %c0_3 = arith.constant 0 : index
    %1 = vector.load %arg1[%c0_1, %c0_2, %c0_3] : memref<1x32x64xf32, #tpu.memory_space<vmem>>, vector<1x32x64xf32>
    %2 = vector.shape_cast %1 : vector<1x32x64xf32> to vector<32x64xf32>
    %3 = tpu.transpose %2, [1, 0] : vector<32x64xf32> -> vector<64x32xf32>
    %4 = arith.addf %3, %0 : vector<64x32xf32>
    %c0_4 = arith.constant 0 : index
    %c0_5 = arith.constant 0 : index
    %c0_6 = arith.constant 0 : index
    %5 = vector.load %arg3[%c0_4, %c0_5, %c0_6] : memref<1x64x32xf32, #tpu.memory_space<vmem>>, vector<1x64x32xf32>
    %6 = vector.shape_cast %5 : vector<1x64x32xf32> to vector<64x32xf32>
    %7 = vector.shape_cast %4 : vector<64x32xf32> to vector<1x64x32xf32>
    tpu.vector_store %arg3[%c0_4, %c0_5, %c0_6], %7 {strides = array<i32>} : memref<1x64x32xf32, #tpu.memory_space<vmem>>, vector<1x64x32xf32>,
    return
  }
  func.func @transform_0(%arg0: i32) -> (i32, i32, i32) {
    %c0_i32 = arith.constant 0 : i32
    %c0_i32_0 = arith.constant 0 : i32
    %c0_i32_1 = arith.constant 0 : i32
    return %arg0, %c0_i32, %c0_i32_0 : i32, i32, i32
  }
  func.func @transform_1(%arg0: i32) -> (i32, i32) {
    %c0_i32 = arith.constant 0 : i32
    %c0_i32_0 = arith.constant 0 : i32
    %c0_i32_1 = arith.constant 0 : i32
    return %c0_i32, %c0_i32_0 : i32, i32
  }
  func.func @transform_2(%arg0: i32) -> (i32, i32, i32) {
    %c0_i32 = arith.constant 0 : i32
    %c0_i32_0 = arith.constant 0 : i32
    %c0_i32_1 = arith.constant 0 : i32
    return %arg0, %c0_i32, %c0_i32_0 : i32, i32, i32
  }
}

</mosaic_0001>

<llo_original>
// kernel: tpu_custom_call.1
$region0: #{tpu_custom_call.1}
  #allocation0 [shape = 'u32[]', space=smem, size = 0x4, offset = 0x4, fixed_abs, tag = 'smem constant byte address 0x4 - core index']
  #allocation1 [shape = 'u32[144,128]{1,0:T(1,128)}', space=vmem, size = 0x12000, scoped, tag = 'internal scratch']
  %s0 = inlined_call_operand.vmem [shape: f32[2,32,64], index: 0, kind: input, shape index: {}]
  %s1 = inlined_call_operand.vmem [shape: f32[64,32], index: 1, kind: input, shape index: {}]
  %s2 = inlined_call_operand.vmem [shape: f32[2,64,32], index: 2, kind: output, shape index: {}]
  %s3 = sld [smem:[#allocation0]]
  $region41: #{tpu_custom_call.1} parent=0
    _
  %s5 = ssub.s32 1, %s3
  %s6 = scalar_select 0, %s5, %s3
  loop: start=0, step=1, limit=4
  $region2: #{tpu_custom_call.1} parent=0 // loop_pre_header
    _
  $region3: #{tpu_custom_call.1} parent=0 // loop_header
    %s8 = sphi 0, %s12
    %p9 = scmp.ge.s32.totalorder %s8, 4
    %s18 = sphi 0, %s20
    %s21 = sphi 0, %s18
    %s22 = sphi 0, %s21
    %s38 = sphi 0, %s22
    %s42 = sphi 0, %s42
    %s44 = sphi 0, %s42
    %s45 = sphi 0, %s44
    %s59 = sphi 0, %s45
    %s65 = sphi 0, %s67
    %s68 = sphi 0, %s65
    %s69 = sphi 0, %s68
    %s85 = sphi 0, %s69
  $region4: #{tpu_custom_call.1} parent=0 // loop_header_branch
    %11 = sbr.rel (%p9) target = $region8
  $region5: #{tpu_custom_call.1} parent=0 // loop_body
    %s13 = ssub.s32 %s8, 1
    %s14 = ssub.s32 %s8, 2
    %s15 = sadd.s32 %s8, 1
    %s16 = ssub.s32 %s8, %s15
    %p17 = scmp.eq.s32.totalorder %s16, 0
    %s19 = sadd.s32 %s18, 1
    %s20 = scalar_select %p17, %s18, %s19
    %p23 = pneg %p17
    %p24 = scmp.eq.s32.totalorder %s8, 1
    %p25 = por %p23, %p24
    %p26 = scmp.ne.s32.totalorder %s18, %s21
    %p27 = scmp.eq.s32.totalorder %s8, 0
    %p28 = por %p26, %p27
    %p29 = scmp.ne.s32.totalorder %s18, %s21
    %p30 = scmp.eq.s32.totalorder %s13, 1
    %p31 = por %p29, %p30
    %p32 = scmp.ne.s32.totalorder %s21, %s22
    %p33 = scmp.eq.s32.totalorder %s13, 0
    %p34 = por %p32, %p33
    %p35 = scmp.ne.s32.totalorder %s21, %s22
    %p36 = scmp.eq.s32.totalorder %s14, 1
    %p37 = por %p35, %p36
    %p39 = scmp.ne.s32.totalorder %s22, %s38
    %p40 = scmp.eq.s32.totalorder %s14, 0
    %p41 = por %p39, %p40
    %s43 = sadd.s32 %s42, 1
    %p46 = scmp.eq.s32.totalorder %s8, 1
    %p47 = scmp.ne.s32.totalorder %s42, %s44
    %p48 = scmp.eq.s32.totalorder %s8, 0
    %p49 = por %p47, %p48
    %p50 = scmp.ne.s32.totalorder %s42, %s44
    %p51 = scmp.eq.s32.totalorder %s13, 1
    %p52 = por %p50, %p51
    %p53 = scmp.ne.s32.totalorder %s44, %s45
    %p54 = scmp.eq.s32.totalorder %s13, 0
    %p55 = por %p53, %p54
    %p56 = scmp.ne.s32.totalorder %s44, %s45
    %p57 = scmp.eq.s32.totalorder %s14, 1
    %p58 = por %p56, %p57
    %p60 = scmp.ne.s32.totalorder %s45, %s59
    %p61 = scmp.eq.s32.totalorder %s14, 0
    %p62 = por %p60, %p61
    %s63 = ssub.s32 %s8, %s15
    %p64 = scmp.eq.s32.totalorder %s63, 0
    %s66 = sadd.s32 %s65, 1
    %s67 = scalar_select %p64, %s65, %s66
    %p70 = pneg %p64
    %p71 = scmp.eq.s32.totalorder %s8, 1
    %p72 = por %p70, %p71
    %p73 = scmp.ne.s32.totalorder %s65, %s68
    %p74 = scmp.eq.s32.totalorder %s8, 0
    %p75 = por %p73, %p74
    %p76 = scmp.ne.s32.totalorder %s65, %s68
    %p77 = scmp.eq.s32.totalorder %s13, 1
    %p78 = por %p76, %p77
    %p79 = scmp.ne.s32.totalorder %s68, %s69
    %p80 = scmp.eq.s32.totalorder %s13, 0
    %p81 = por %p79, %p80
    %p82 = scmp.ne.s32.totalorder %s68, %s69
    %p83 = scmp.eq.s32.totalorder %s14, 1
    %p84 = por %p82, %p83
    %p86 = scmp.ne.s32.totalorder %s69, %s85
    %p87 = scmp.eq.s32.totalorder %s14, 0
    %p88 = por %p86, %p87
    %p89 = scmp.le.s32.totalorder 1, %s8
    %p90 = scmp.lt.s32.totalorder %s8, 3
    %p91 = pnand %p89, %p90
    %p92 = pneg %p91
    // Predicated region
    $region9: #{tpu_custom_call.1} parent=5 // pred_check
      _
    $region10: #{tpu_custom_call.1} parent=5 // pred_check_branch
      %94 = sbr.rel (%p91) target = $region12
    $region11: #{tpu_custom_call.1} parent=5 // pred_region
      %s95 = ssub.s32 %s8, 1
      // Predicated region
      $region13: #{tpu_custom_call.1} parent=11 // pred_check
        %p96 = pneg %p55
      $region14: #{tpu_custom_call.1} parent=11 // pred_check_branch
        %98 = sbr.rel (%p96) target = $region16
      $region15: #{tpu_custom_call.1} parent=11 // pred_region
        _
      $region16: #{tpu_custom_call.1} parent=11 // pred_fallthru
        _
    $region12: #{tpu_custom_call.1} parent=5 // pred_fallthru
      _
    %p99 = scmp.lt.s32.totalorder %s8, 2
    // Predicated region
    $region17: #{tpu_custom_call.1} parent=5 // pred_check
      %p100 = pneg %p99
    $region18: #{tpu_custom_call.1} parent=5 // pred_check_branch
      %102 = sbr.rel (%p100) target = $region20
    $region19: #{tpu_custom_call.1} parent=5 // pred_region
      // Predicated region
      $region21: #{tpu_custom_call.1} parent=19 // pred_check
        %p103 = pneg %p28
      $region22: #{tpu_custom_call.1} parent=19 // pred_check_branch
        %105 = sbr.rel (%p103) target = $region24
      $region23: #{tpu_custom_call.1} parent=19 // pred_region
        %p106 = scmp.lt.s32.totalorder %s8, 1
        %s107 = scalar_select %p106, %s8, 1
        %s108 = smul.addr %s107, 4
        %s109 = smul.addr %s108, 8
        %s110 = scalar_lea.vmem %s0, %s109
      $region24: #{tpu_custom_call.1} parent=19 // pred_fallthru
        _
    $region20: #{tpu_custom_call.1} parent=5 // pred_fallthru
      _
    %p111 = scmp.le.s32.totalorder 1, %s8
    %p112 = scmp.lt.s32.totalorder %s8, 3
    %p113 = pnand %p111, %p112
    %p114 = pneg %p113
    // Predicated region
    $region25: #{tpu_custom_call.1} parent=5 // pred_check
      _
    $region26: #{tpu_custom_call.1} parent=5 // pred_check_branch
      %116 = sbr.rel (%p113) target = $region28
    $region27: #{tpu_custom_call.1} parent=5 // pred_region
      %s117 = ssub.s32 %s8, 1
      %p118 = scmp.lt.s32.totalorder %s13, 1
      %s119 = scalar_select %p118, %s13, 1
      %s120 = smul.addr %s119, 4
      %s121 = smul.addr %s120, 8
      %s122 = scalar_lea.vmem %s0, %s121
      %p123 = pneg %p34
      %p124 = pneg %p31
      %p125 = pneg %p55
      %p126 = pneg %p52
      %p127 = pneg %p81
      %p128 = pneg %p78
      %p129 = scmp.lt.s32.totalorder %s13, 1
      %s130 = scalar_select %p129, %s13, 1
      %s131 = smul.addr %s130, 8
      %s132 = smul.addr %s131, 8
      %s133 = scalar_lea.vmem %s2, %s132
      %p134 = scmp.lt.s32.totalorder %s13, 1
      %s135 = scalar_select %p134, %s13, 1
      %s136 = smul.addr %s135, 4
      %s137 = smul.addr %s136, 8
      %s138 = scalar_lea.vmem %s0, %s137
      %p139 = scmp.lt.s32.totalorder %s13, 1
      %s140 = scalar_select %p139, %s13, 1
      %s141 = smul.addr %s140, 8
      %s142 = smul.addr %s141, 8
      %s143 = scalar_lea.vmem %s2, %s142
      %v144 = vld [vmem:[%s1] sm:$0xff]
      %v145 = vld [vmem:[%s1 + $0x8] sm:$0xff]
      %v146 = vld [vmem:[%s1 + $0x10] sm:$0xff]
      %v147 = vld [vmem:[%s1 + $0x18] sm:$0xff]
      %v148 = vld [vmem:[%s1 + $0x20] sm:$0xff]
      %v149 = vld [vmem:[%s1 + $0x28] sm:$0xff]
      %v150 = vld [vmem:[%s1 + $0x30] sm:$0xff]
      %v151 = vld [vmem:[%s1 + $0x38] sm:$0xff]
      %v152 = vld [vmem:[%s138] sm:$0xff]
      %v153 = vld [vmem:[%s138 + $0x8] sm:$0xff]
      %v154 = vld [vmem:[%s138 + $0x10] sm:$0xff]
      %v155 = vld [vmem:[%s138 + $0x18] sm:$0xff]
      %156 = vxpose.xlu0.b32.start [1/16] %v152, 128
      %157 = vxpose.xlu0.b32.cont [2/16] %v153, 128
      %158 = vxpose.xlu0.b32.cont [3/16] %v154, 128
      %159 = vxpose.xlu0.b32.cont [4/16] %v155, 128
      %160 = vxpose.xlu0.b32.cont [5/16] 0.0, 128
      %161 = vxpose.xlu0.b32.cont [6/16] 0.0, 128
      %162 = vxpose.xlu0.b32.cont [7/16] 0.0, 128
      %163 = vxpose.xlu0.b32.cont [8/16] 0.0, 128
      %164 = vxpose.xlu0.b32.cont [9/16] 0.0, 128
      %165 = vxpose.xlu0.b32.cont [10/16] 0.0, 128
      %166 = vxpose.xlu0.b32.cont [11/16] 0.0, 128
      %167 = vxpose.xlu0.b32.cont [12/16] 0.0, 128
      %168 = vxpose.xlu0.b32.cont [13/16] 0.0, 128
      %169 = vxpose.xlu0.b32.cont [14/16] 0.0, 128
      %170 = vxpose.xlu0.b32.cont [15/16] 0.0, 128
      %171 = vxpose.xlu0.b32.end [16/16] 0.0, 128
      %v172 = vpop.trf.xlu0
      %v173 = vpop.trf.xlu0
      %v174 = vpop.trf.xlu0
      %v175 = vpop.trf.xlu0
      %v176 = vpop.trf.xlu0
      %v177 = vpop.trf.xlu0
      %v178 = vpop.trf.xlu0
      %v179 = vpop.trf.xlu0
      %v180 = vpop.trf.xlu0
      %v181 = vpop.trf.xlu0
      %v182 = vpop.trf.xlu0
      %v183 = vpop.trf.xlu0
      %v184 = vpop.trf.xlu0
      %v185 = vpop.trf.xlu0
      %v186 = vpop.trf.xlu0
      %v187 = vpop.trf.xlu0
      %v188 = vadd.f32 %v172, %v144
      %v189 = vadd.f32 %v173, %v145
      %v190 = vadd.f32 %v174, %v146
      %v191 = vadd.f32 %v175, %v147
      %v192 = vadd.f32 %v176, %v148
      %v193 = vadd.f32 %v177, %v149
      %v194 = vadd.f32 %v178, %v150
      %v195 = vadd.f32 %v179, %v151
      %vm196 = vcmask 261120
      %197 = vst.msk [vmem:[%s143] sm:$0xff] %vm196, %v188
      %198 = vst.msk [vmem:[%s143 + $0x8] sm:$0xff] %vm196, %v189
      %199 = vst.msk [vmem:[%s143 + $0x10] sm:$0xff] %vm196, %v190
      %200 = vst.msk [vmem:[%s143 + $0x18] sm:$0xff] %vm196, %v191
      %201 = vst.msk [vmem:[%s143 + $0x20] sm:$0xff] %vm196, %v192
      %202 = vst.msk [vmem:[%s143 + $0x28] sm:$0xff] %vm196, %v193
      %203 = vst.msk [vmem:[%s143 + $0x30] sm:$0xff] %vm196, %v194
      %204 = vst.msk [vmem:[%s143 + $0x38] sm:$0xff] %vm196, %v195
      %p205 = scmp.lt.s32.totalorder %s13, 1
      %s206 = scalar_select %p205, %s13, 1
      %s207 = smul.addr %s206, 8
      %s208 = smul.addr %s207, 8
      %s209 = scalar_lea.vmem %s2, %s208
      // Predicated region
      $region29: #{tpu_custom_call.1} parent=27 // pred_check
        %p210 = pneg %p78
      $region30: #{tpu_custom_call.1} parent=27 // pred_check_branch
        %212 = sbr.rel (%p210) target = $region32
      $region31: #{tpu_custom_call.1} parent=27 // pred_region
        _
      $region32: #{tpu_custom_call.1} parent=27 // pred_fallthru
        _
    $region28: #{tpu_custom_call.1} parent=5 // pred_fallthru
      _
    %p213 = scmp.le.s32.totalorder 2, %s8
    // Predicated region
    $region33: #{tpu_custom_call.1} parent=5 // pred_check
      %p214 = pneg %p213
    $region34: #{tpu_custom_call.1} parent=5 // pred_check_branch
      %216 = sbr.rel (%p214) target = $region36
    $region35: #{tpu_custom_call.1} parent=5 // pred_region
      %s217 = ssub.s32 %s8, 2
      // Predicated region
      $region37: #{tpu_custom_call.1} parent=35 // pred_check
        %p218 = pneg %p84
      $region38: #{tpu_custom_call.1} parent=35 // pred_check_branch
        %220 = sbr.rel (%p218) target = $region40
      $region39: #{tpu_custom_call.1} parent=35 // pred_region
        %p221 = scmp.lt.s32.totalorder %s14, 1
        %s222 = scalar_select %p221, %s14, 1
        %s223 = smul.addr %s222, 8
        %s224 = smul.addr %s223, 8
        %s225 = scalar_lea.vmem %s2, %s224
      $region40: #{tpu_custom_call.1} parent=35 // pred_fallthru
        _
    $region36: #{tpu_custom_call.1} parent=5 // pred_fallthru
      _
  $region6: #{tpu_custom_call.1} parent=0 // loop_footer
    %s12 = sadd.s32 1, %s8
  $region7: #{tpu_custom_call.1} parent=0 // loop_footer_branch
    %7 = sbr.rel target = $region3
  $region8: #{tpu_custom_call.1} parent=0 // loop_exit
    _

</llo_original>
